<compile_context>
chip_gen: v7x
topology: tpu7x:2x2x1
jax: 0.10.0
libtpu: 0.0.40
codegen_flags: <defaults>
</compile_context>

<pallas_src>
import functools

import jax
import jax.numpy as jnp
from jax.experimental import pallas as pl
from jax.experimental.pallas import tpu as pltpu


def _round_up(x, m):
    return (x + m - 1) // m * m


def _make_fused_mlp_kernel(num_layers):
    """Kernel over one batch tile: h = relu(h @ w_i + s_i) for each layer, all in VMEM."""

    def kernel(x_ref, *refs):
        o_ref = refs[-1]
        h = x_ref[...]
        for i in range(num_layers):
            w = refs[2 * i][...]        # (K_i_pad, N_i_pad) folded (weight * bn_scale)
            s = refs[2 * i + 1][...]    # (1, N_i_pad)       folded (bias*scale + shift)
            h = jnp.dot(h, w, preferred_element_type=jnp.float32) + s
            h = jnp.maximum(h, 0.0)     # ReLU (padded columns stay exactly 0)
        o_ref[...] = h.astype(o_ref.dtype)

    return kernel


def _resident(_i):
    # Constant block index: weight/shift tiles stay resident across the batch grid.
    return (0, 0)


def _fused_mlp_pallas(x_pad, flat_params, tm):
    """x_pad: (M_pad, K0_pad) f32; flat_params: (w1, s1, w2, s2, ...), all lane-padded."""
    M_pad, K0p = x_pad.shape
    num_layers = len(flat_params) // 2
    out_pad = flat_params[-1].shape[-1]

    in_specs = [pl.BlockSpec((tm, K0p), lambda i: (i, 0))]
    for j in range(num_layers):
        w = flat_params[2 * j]
        s = flat_params[2 * j + 1]
        in_specs.append(pl.BlockSpec(w.shape, _resident))  # weights resident in VMEM
        in_specs.append(pl.BlockSpec(s.shape, _resident))  # shift resident in VMEM

    return pl.pallas_call(
        _make_fused_mlp_kernel(num_layers),
        out_shape=jax.ShapeDtypeStruct((M_pad, out_pad), jnp.float32),
        grid_spec=pltpu.PrefetchScalarGridSpec(
            num_scalar_prefetch=0,
            grid=(M_pad // tm,),
            in_specs=in_specs,
            out_specs=pl.BlockSpec((tm, out_pad), lambda i: (i, 0)),
        ),
        compiler_params=pltpu.CompilerParams(
            dimension_semantics=("parallel",),   # batch axis: shardable across v7x TCs
        ),
    )(x_pad, *flat_params)


def _mlp_forward(x, flat_params, *, k0_pad, out_features, tm_cap=256):
    M, K = x.shape
    tm = tm_cap if M >= tm_cap else _round_up(M, 8)
    M_pad = _round_up(M, tm)
    x = x.astype(jnp.float32)
    if (M_pad, k0_pad) != (M, K):
        xp = jnp.zeros((M_pad, k0_pad), jnp.float32)
        x = xp.at[:M, :K].set(x)
    y = _fused_mlp_pallas(x, flat_params, tm)
    return y[:M, :out_features]


class MLPPallas:
    """Mirror of dassl MLP: per hidden layer Linear -> BatchNorm1d -> ReLU.

    bn=True, activation='relu', dropout=0.0 (the module defaults). BatchNorm1d is applied
    in eval mode (running statistics, initialized deterministically in-script) and folded
    with the Linear bias into the weights/shift at construction time.
    """

    def __init__(self, key, in_features, hidden_layers, eps=1e-5):
        if isinstance(hidden_layers, int):
            hidden_layers = [hidden_layers]
        assert len(hidden_layers) > 0
        self.in_features = in_features
        self.out_features = hidden_layers[-1]

        self.raw_layers = []      # (w_t, b, scale, shift) kept for the pure-JAX reference
        flat_params = []          # folded + lane-padded (w', s') pairs consumed by the kernel
        fan_in = in_features
        k_pad = _round_up(in_features, 128)
        self.k0_pad = k_pad

        for h in hidden_layers:
            key, kw, kb, kg, kbe, km, kv = jax.random.split(key, 7)
            # nn.Linear init: weight (h, fan_in), bias (h,)
            bound = 1.0 / jnp.sqrt(fan_in)
            w = jax.random.uniform(kw, (h, fan_in), jnp.float32, -bound, bound)
            b = jax.random.uniform(kb, (h,), jnp.float32, -bound, bound)
            # nn.BatchNorm1d params + deterministic synthetic running stats (eval mode)
            gamma = 1.0 + 0.1 * jax.random.normal(kg, (h,), jnp.float32)
            beta = 0.1 * jax.random.normal(kbe, (h,), jnp.float32)
            run_mean = 0.1 * jax.random.normal(km, (h,), jnp.float32)
            run_var = 1.0 + 0.1 * jax.random.uniform(kv, (h,), jnp.float32)

            scale = gamma / jnp.sqrt(run_var + eps)
            shift = beta - run_mean * scale
            self.raw_layers.append((w.T, b, scale, shift))

            # Fold bias + BN into the weight / shift.
            w_folded = w.T * scale[None, :]          # (fan_in, h)
            s_folded = b * scale + shift             # (h,)

            h_pad = _round_up(h, 128)
            w_p = jnp.zeros((k_pad, h_pad), jnp.float32).at[:fan_in, :h].set(w_folded)
            s_p = jnp.zeros((1, h_pad), jnp.float32).at[0, :h].set(s_folded)
            flat_params += [w_p, s_p]

            fan_in = h
            k_pad = h_pad

        self.flat_params = tuple(flat_params)
        self._forward = jax.jit(functools.partial(
            _mlp_forward,
            k0_pad=self.k0_pad,
            out_features=self.out_features,
        ))

    def __call__(self, x):
        return self._forward(x, self.flat_params)


def _reference(model, x):
    # Pure-JAX reference with the original (un-folded) per-layer semantics:
    # Linear -> BatchNorm1d(eval) -> ReLU.
    h = x
    for w_t, b, scale, shift in model.raw_layers:
        y = h @ w_t + b
        y = y * scale + shift
        h = jnp.maximum(y, 0.0)
    return h


if __name__ == "__main__":
    key = jax.random.PRNGKey(0)
    k_params, k_x = jax.random.split(key)

    batch = 16
    in_features = 256
    hidden_layers = [128, 64]

    model = MLPPallas(k_params, in_features, hidden_layers)
    x = jax.random.normal(k_x, (batch, in_features), jnp.float32)

    out = jax.block_until_ready(model(x))
    assert out.shape == (batch, model.out_features)

    ref = _reference(model, x)
    assert jnp.allclose(out, ref, atol=1e-4, rtol=1e-4)

    print("KERNEL_OK")
</pallas_src>

<mosaic_0001>
module attributes {stable_mosaic.version = 11 : i64} {
  func.func @kernel(%arg0: i32, %arg1: memref<16x256xf32, #tpu.memory_space<vmem>>, %arg2: memref<256x128xf32, #tpu.memory_space<vmem>>, %arg3: memref<1x128xf32, #tpu.memory_space<vmem>>, %arg4: memref<128x128xf32, #tpu.memory_space<vmem>>, %arg5: memref<1x128xf32, #tpu.memory_space<vmem>>, %arg6: memref<16x128xf32, #tpu.memory_space<vmem>>) attributes {dimension_semantics = [#tpu.dimension_semantics<parallel>], iteration_bounds = array<i64: 1>, scalar_prefetch = 0 : i64, scratch_operands = 0 : i64, tpu.core_type = #tpu.core_type<tc>, window_params = [{transform_indices = @transform_0, window_bounds = array<i64: 16, 256>}, {pipeline_mode = #tpu.pipeline_mode<synchronous>, transform_indices = @transform_1, window_bounds = array<i64: 256, 128>}, {pipeline_mode = #tpu.pipeline_mode<synchronous>, transform_indices = @transform_2, window_bounds = array<i64: 1, 128>}, {pipeline_mode = #tpu.pipeline_mode<synchronous>, transform_indices = @transform_3, window_bounds = array<i64: 128, 128>}, {pipeline_mode = #tpu.pipeline_mode<synchronous>, transform_indices = @transform_4, window_bounds = array<i64: 1, 128>}, {transform_indices = @transform_5, window_bounds = array<i64: 16, 128>}]} {
    %c0 = arith.constant 0 : index
    %c0_0 = arith.constant 0 : index
    %0 = vector.load %arg1[%c0, %c0_0] : memref<16x256xf32, #tpu.memory_space<vmem>>, vector<16x256xf32>
    %c0_1 = arith.constant 0 : index
    %c0_2 = arith.constant 0 : index
    %1 = vector.load %arg2[%c0_1, %c0_2] : memref<256x128xf32, #tpu.memory_space<vmem>>, vector<256x128xf32>
    %c0_3 = arith.constant 0 : index
    %c0_4 = arith.constant 0 : index
    %2 = vector.load %arg3[%c0_3, %c0_4] : memref<1x128xf32, #tpu.memory_space<vmem>>, vector<1x128xf32>
    %cst = arith.constant dense<0.000000e+00> : vector<16x128xf32>
    %3 = tpu.matmul %0, %1, %cst {dimension_numbers = #tpu.dot_dimension_numbers<[1], [0], [0], [1], [0, 0, 1, 1], [], []>} : vector<16x256xf32>, vector<256x128xf32>, vector<16x128xf32> -> vector<16x128xf32>
    %4 = vector.broadcast %2 : vector<1x128xf32> to vector<16x128xf32>
    %5 = arith.addf %3, %4 : vector<16x128xf32>
    %cst_5 = arith.constant 0.000000e+00 : f32
    %6 = vector.broadcast %cst_5 : f32 to vector<16x128xf32>
    %7 = arith.maximumf %5, %6 : vector<16x128xf32>
    %c0_6 = arith.constant 0 : index
    %c0_7 = arith.constant 0 : index
    %8 = vector.load %arg4[%c0_6, %c0_7] : memref<128x128xf32, #tpu.memory_space<vmem>>, vector<128x128xf32>
    %c0_8 = arith.constant 0 : index
    %c0_9 = arith.constant 0 : index
    %9 = vector.load %arg5[%c0_8, %c0_9] : memref<1x128xf32, #tpu.memory_space<vmem>>, vector<1x128xf32>
    %cst_10 = arith.constant dense<0.000000e+00> : vector<16x128xf32>
    %10 = tpu.matmul %7, %8, %cst_10 {dimension_numbers = #tpu.dot_dimension_numbers<[1], [0], [0], [1], [0, 0, 1, 1], [], []>} : vector<16x128xf32>, vector<128x128xf32>, vector<16x128xf32> -> vector<16x128xf32>
    %11 = vector.broadcast %9 : vector<1x128xf32> to vector<16x128xf32>
    %12 = arith.addf %10, %11 : vector<16x128xf32>
    %cst_11 = arith.constant 0.000000e+00 : f32
    %13 = vector.broadcast %cst_11 : f32 to vector<16x128xf32>
    %14 = arith.maximumf %12, %13 : vector<16x128xf32>
    %c0_12 = arith.constant 0 : index
    %c0_13 = arith.constant 0 : index
    %15 = vector.load %arg6[%c0_12, %c0_13] : memref<16x128xf32, #tpu.memory_space<vmem>>, vector<16x128xf32>
    tpu.vector_store %arg6[%c0_12, %c0_13], %14 {strides = array<i32>} : memref<16x128xf32, #tpu.memory_space<vmem>>, vector<16x128xf32>,
    return
  }
  func.func @transform_0(%arg0: i32) -> (i32, i32) {
    %c0_i32 = arith.constant 0 : i32
    %c0_i32_0 = arith.constant 0 : i32
    return %arg0, %c0_i32 : i32, i32
  }
  func.func @transform_1(%arg0: i32) -> (i32, i32) {
    %c0_i32 = arith.constant 0 : i32
    %c0_i32_0 = arith.constant 0 : i32
    %c0_i32_1 = arith.constant 0 : i32
    return %c0_i32, %c0_i32_0 : i32, i32
  }
  func.func @transform_2(%arg0: i32) -> (i32, i32) {
    %c0_i32 = arith.constant 0 : i32
    %c0_i32_0 = arith.constant 0 : i32
    %c0_i32_1 = arith.constant 0 : i32
    return %c0_i32, %c0_i32_0 : i32, i32
  }
  func.func @transform_3(%arg0: i32) -> (i32, i32) {
    %c0_i32 = arith.constant 0 : i32
    %c0_i32_0 = arith.constant 0 : i32
    %c0_i32_1 = arith.constant 0 : i32
    return %c0_i32, %c0_i32_0 : i32, i32
  }
  func.func @transform_4(%arg0: i32) -> (i32, i32) {
    %c0_i32 = arith.constant 0 : i32
    %c0_i32_0 = arith.constant 0 : i32
    %c0_i32_1 = arith.constant 0 : i32
    return %c0_i32, %c0_i32_0 : i32, i32
  }
  func.func @transform_5(%arg0: i32) -> (i32, i32) {
    %c0_i32 = arith.constant 0 : i32
    %c0_i32_0 = arith.constant 0 : i32
    return %arg0, %c0_i32 : i32, i32
  }
}

</mosaic_0001>

<llo_original>
// kernel: _mlp_forward.1
$region0: #{_mlp_forward.1}
  #allocation0 [shape = 'u32[]', space=smem, size = 0x4, offset = 0x4, fixed_abs, tag = 'smem constant byte address 0x4 - core index']
  #allocation1 [shape = 'u32[144,128]{1,0:T(1,128)}', space=vmem, size = 0x12000, scoped, tag = 'internal scratch']
  %s0 = inlined_call_operand.hbm [shape: f32[16,256], index: 0, kind: input, shape index: {}]
  %s1 = inlined_call_operand.hbm [shape: f32[256,128], index: 1, kind: input, shape index: {}]
  %s2 = inlined_call_operand.vmem [shape: f32[1,128], index: 2, kind: input, shape index: {}]
  %s3 = inlined_call_operand.hbm [shape: f32[128,128], index: 3, kind: input, shape index: {}]
  %s4 = inlined_call_operand.vmem [shape: f32[1,128], index: 4, kind: input, shape index: {}]
  %s5 = inlined_call_operand.hbm [shape: f32[16,128], index: 5, kind: output, shape index: {}]
  %s6 = sld [smem:[#allocation0]]
  $region42: #{_mlp_forward.1} parent=0
    _
  %s8 = ssub.s32 1, %s6
  %s9 = scalar_select 0, %s8, %s6
  $region1: #{_mlp_forward.1} parent=0
    #allocation2 [shape = 'u8[16384]{0}', space=vmem, size = 0x4000, scoped, tag = 'input window, operand 0, single buffered']
    #allocation3 [shape = 's32[1]{0}', space=sflag, size = 0x4, scoped, tag = 'scoped memory for _mlp_forward.1']
    #allocation4 [shape = 's32[1]{0}', space=sflag, size = 0x4, scoped, tag = 'scoped memory for _mlp_forward.1']
    #allocation5 [shape = 'u8[131072]{0}', space=vmem, size = 0x20000, scoped, tag = 'input window, operand 1, single buffered']
    #allocation6 [shape = 's32[1]{0}', space=sflag, size = 0x4, scoped, tag = 'scoped memory for _mlp_forward.1']
    #allocation7 [shape = 'u8[65536]{0}', space=vmem, size = 0x10000, scoped, tag = 'input window, operand 3, single buffered']
    #allocation8 [shape = 'u8[8192]{0}', space=vmem, size = 0x2000, scoped, tag = 'output window, operand 0, single buffered']
    %10 = vsyncpa [#allocation3], 0
    %11 = vsyncpa [#allocation6], 0
    %12 = vsyncpa [#allocation4], 0
    // Predicated region
    $region2: #{_mlp_forward.1} parent=1 // pred_check
      _
    $region3: #{_mlp_forward.1} parent=1 // pred_check_branch
      %14 = sbr.rel (0) target = $region5
    $region4: #{_mlp_forward.1} parent=1 // pred_region
      %s16 = ssub.s32 512, 512
      %17 = vsyncadd [#allocation3], %s16
      %s18 = sshll.u32 [#allocation2], 4
      %s19 = int_to_ptr.vmem [resolvable:$true] %s18
      %24 = dma.hbm_to_vmem [thread:$0]  %s0, 512, %s19, [#allocation3], 256, 256, 16
    $region5: #{_mlp_forward.1} parent=1 // pred_fallthru
      _
    // Predicated region
    $region6: #{_mlp_forward.1} parent=1 // pred_check
      _
    $region7: #{_mlp_forward.1} parent=1 // pred_check_branch
      %26 = sbr.rel (0) target = $region9
    $region8: #{_mlp_forward.1} parent=1 // pred_region
      %s28 = ssub.s32 4096, 4096
      %29 = vsyncadd [#allocation6], %s28
      %s30 = sshll.u32 [#allocation5], 4
      %s31 = int_to_ptr.vmem [resolvable:$true] %s30
      %36 = dma.hbm_to_vmem [thread:$0]  %s1, 4096, %s31, [#allocation6], 128, 128, 8
    $region9: #{_mlp_forward.1} parent=1 // pred_fallthru
      _
    // Predicated region
    $region10: #{_mlp_forward.1} parent=1 // pred_check
      _
    $region11: #{_mlp_forward.1} parent=1 // pred_check_branch
      %38 = sbr.rel (0) target = $region13
    $region12: #{_mlp_forward.1} parent=1 // pred_region
      _
    $region13: #{_mlp_forward.1} parent=1 // pred_fallthru
      _
    // Predicated region
    $region14: #{_mlp_forward.1} parent=1 // pred_check
      _
    $region15: #{_mlp_forward.1} parent=1 // pred_check_branch
      %40 = sbr.rel (0) target = $region17
    $region16: #{_mlp_forward.1} parent=1 // pred_region
      %s42 = ssub.s32 2048, 2048
      %43 = vsyncadd [#allocation6], %s42
      %s44 = sshll.u32 [#allocation7], 4
      %s45 = int_to_ptr.vmem [resolvable:$true] %s44
      %50 = dma.hbm_to_vmem [thread:$0]  %s3, 2048, %s45, [#allocation6], 128, 128, 8
    $region17: #{_mlp_forward.1} parent=1 // pred_fallthru
      _
    // Predicated region
    $region18: #{_mlp_forward.1} parent=1 // pred_check
      _
    $region19: #{_mlp_forward.1} parent=1 // pred_check_branch
      %52 = sbr.rel (0) target = $region21
    $region20: #{_mlp_forward.1} parent=1 // pred_region
      _
    $region21: #{_mlp_forward.1} parent=1 // pred_fallthru
      _
    // Predicated region
    $region22: #{_mlp_forward.1} parent=1 // pred_check
      _
    $region23: #{_mlp_forward.1} parent=1 // pred_check_branch
      %54 = sbr.rel (0) target = $region25
    $region24: #{_mlp_forward.1} parent=1 // pred_region
      %55 = dma.done [#allocation3], 512
    $region25: #{_mlp_forward.1} parent=1 // pred_fallthru
      _
    // Predicated region
    $region26: #{_mlp_forward.1} parent=1 // pred_check
      _
    $region27: #{_mlp_forward.1} parent=1 // pred_check_branch
      %57 = sbr.rel (0) target = $region29
    $region28: #{_mlp_forward.1} parent=1 // pred_region
      %58 = dma.done [#allocation6], 4096
    $region29: #{_mlp_forward.1} parent=1 // pred_fallthru
      _
    // Predicated region
    $region30: #{_mlp_forward.1} parent=1 // pred_check
      _
    $region31: #{_mlp_forward.1} parent=1 // pred_check_branch
      %60 = sbr.rel (0) target = $region33
    $region32: #{_mlp_forward.1} parent=1 // pred_region
      %61 = dma.done [#allocation6], 2048
    $region33: #{_mlp_forward.1} parent=1 // pred_fallthru
      _
    %v62 = vld [vmem:[#allocation2] sm:$0xff]
    %v63 = vld [vmem:[#allocation2 + $0x8] sm:$0xff]
    %v64 = vld [vmem:[#allocation2 + $0x10] sm:$0xff]
    %v65 = vld [vmem:[#allocation2 + $0x18] sm:$0xff]
    %v66 = vld [vmem:[#allocation5] sm:$0xff]
    %v67 = vld [vmem:[#allocation5 + $0x8] sm:$0xff]
    %v68 = vld [vmem:[#allocation5 + $0x10] sm:$0xff]
    %v69 = vld [vmem:[#allocation5 + $0x18] sm:$0xff]
    %v70 = vld [vmem:[#allocation5 + $0x20] sm:$0xff]
    %v71 = vld [vmem:[#allocation5 + $0x28] sm:$0xff]
    %v72 = vld [vmem:[#allocation5 + $0x30] sm:$0xff]
    %v73 = vld [vmem:[#allocation5 + $0x38] sm:$0xff]
    %v74 = vld [vmem:[#allocation5 + $0x40] sm:$0xff]
    %v75 = vld [vmem:[#allocation5 + $0x48] sm:$0xff]
    %v76 = vld [vmem:[#allocation5 + $0x50] sm:$0xff]
    %v77 = vld [vmem:[#allocation5 + $0x58] sm:$0xff]
    %v78 = vld [vmem:[#allocation5 + $0x60] sm:$0xff]
    %v79 = vld [vmem:[#allocation5 + $0x68] sm:$0xff]
    %v80 = vld [vmem:[#allocation5 + $0x70] sm:$0xff]
    %v81 = vld [vmem:[#allocation5 + $0x78] sm:$0xff]
    %v82 = vld [vmem:[#allocation5 + $0x80] sm:$0xff]
    %v83 = vld [vmem:[#allocation5 + $0x88] sm:$0xff]
    %v84 = vld [vmem:[#allocation5 + $0x90] sm:$0xff]
    %v85 = vld [vmem:[#allocation5 + $0x98] sm:$0xff]
    %v86 = vld [vmem:[#allocation5 + $0xa0] sm:$0xff]
    %v87 = vld [vmem:[#allocation5 + $0xa8] sm:$0xff]
    %v88 = vld [vmem:[#allocation5 + $0xb0] sm:$0xff]
    %v89 = vld [vmem:[#allocation5 + $0xb8] sm:$0xff]
    %v90 = vld [vmem:[#allocation5 + $0xc0] sm:$0xff]
    %v91 = vld [vmem:[#allocation5 + $0xc8] sm:$0xff]
    %v92 = vld [vmem:[#allocation5 + $0xd0] sm:$0xff]
    %v93 = vld [vmem:[#allocation5 + $0xd8] sm:$0xff]
    %v94 = vld [vmem:[#allocation5 + $0xe0] sm:$0xff]
    %v95 = vld [vmem:[#allocation5 + $0xe8] sm:$0xff]
    %v96 = vld [vmem:[#allocation5 + $0xf0] sm:$0xff]
    %v97 = vld [vmem:[#allocation5 + $0xf8] sm:$0xff]
    %v98 = vld [vmem:[%s2] sm:$0x1]
    %v100 = vlaneseq
    %v101 = vshrl.u32 %v100, 7
    %v102 = vsub.s32 0, %v101
    %v103 = vrot.slane %v98, %v102
    %105 = vmatprep.subr.mxu0 0.0
    %106 = vmatpush1.msra.mxu0 %v66
    %107 = vmatprep.subr.mxu0 0.0
    %108 = vmatpush1.msra.mxu0 %v67
    %109 = vmatprep.subr.mxu0 0.0
    %110 = vmatpush1.msra.mxu0 %v68
    %111 = vmatprep.subr.mxu0 0.0
    %112 = vmatpush1.msra.mxu0 %v69
    %113 = vmatprep.subr.mxu0 0.0
    %114 = vmatpush1.msra.mxu0 %v70
    %115 = vmatprep.subr.mxu0 0.0
    %116 = vmatpush1.msra.mxu0 %v71
    %117 = vmatprep.subr.mxu0 0.0
    %118 = vmatpush1.msra.mxu0 %v72
    %119 = vmatprep.subr.mxu0 0.0
    %120 = vmatpush1.msra.mxu0 %v73
    %121 = vmatprep.subr.mxu0 0.0
    %122 = vmatpush1.msra.mxu0 %v74
    %123 = vmatprep.subr.mxu0 0.0
    %124 = vmatpush1.msra.mxu0 %v75
    %125 = vmatprep.subr.mxu0 0.0
    %126 = vmatpush1.msra.mxu0 %v76
    %127 = vmatprep.subr.mxu0 0.0
    %128 = vmatpush1.msra.mxu0 %v77
    %129 = vmatprep.subr.mxu0 0.0
    %130 = vmatpush1.msra.mxu0 %v78
    %131 = vmatprep.subr.mxu0 0.0
    %132 = vmatpush1.msra.mxu0 %v79
    %133 = vmatprep.subr.mxu0 0.0
    %134 = vmatpush1.msra.mxu0 %v80
    %135 = vmatprep.subr.mxu0 0.0
    %136 = vmatpush1.msra.mxu0 %v81
    %137 = vmatprep.subr.mxu0 0.0
    %138 = vmatpush1.msra.mxu0 %v82
    %139 = vmatprep.subr.mxu0 0.0
    %140 = vmatpush1.msra.mxu0 %v83
    %141 = vmatprep.subr.mxu0 0.0
    %142 = vmatpush1.msra.mxu0 %v84
    %143 = vmatprep.subr.mxu0 0.0
    %144 = vmatpush1.msra.mxu0 %v85
    %145 = vmatprep.subr.mxu0 0.0
    %146 = vmatpush1.msra.mxu0 %v86
    %147 = vmatprep.subr.mxu0 0.0
    %148 = vmatpush1.msra.mxu0 %v87
    %149 = vmatprep.subr.mxu0 0.0
    %150 = vmatpush1.msra.mxu0 %v88
    %151 = vmatprep.subr.mxu0 0.0
    %152 = vmatpush1.msra.mxu0 %v89
    %153 = vmatprep.subr.mxu0 0.0
    %154 = vmatpush1.msra.mxu0 %v90
    %155 = vmatprep.subr.mxu0 0.0
    %156 = vmatpush1.msra.mxu0 %v91
    %157 = vmatprep.subr.mxu0 0.0
    %158 = vmatpush1.msra.mxu0 %v92
    %159 = vmatprep.subr.mxu0 0.0
    %160 = vmatpush1.msra.mxu0 %v93
    %161 = vmatprep.subr.mxu0 0.0
    %162 = vmatpush1.msra.mxu0 %v94
    %163 = vmatprep.subr.mxu0 0.0
    %164 = vmatpush1.msra.mxu0 %v95
    %165 = vmatprep.subr.mxu0 0.0
    %166 = vmatpush1.msra.mxu0 %v96
    %167 = vmatprep.subr.mxu0 0.0
    %168 = vmatpush1.msra.mxu0 %v97
    %169 = vmatprep.mubr.f32.mxu0 %v63
    %170 = vmatmul.mubr.f32.gmra.mrb[0].mxu0 %v62
    %v171 = vpop.f32.mrb[0].mxu0
    %v172 = vadd.f32 %v103, %v171
    %v173 = vpop.f32.mrb[0].mxu0
    %174 = vmatprep.mubr.f32.mxu0 %v65
    %175 = vmatmul.mubr.f32.gmra.mrb[0].mxu0 %v64
    %v176 = vpop.f32.mrb[0].mxu0
    %v177 = vadd.f32 %v103, %v176
    %v178 = vpop.f32.mrb[0].mxu0
    %179 = vdwg.mxu0
    %v180 = vmax.f32 %v172, 0.0
    %v181 = vmax.f32 %v177, 0.0
    %v182 = vld [vmem:[#allocation7] sm:$0xff]
    %v183 = vld [vmem:[#allocation7 + $0x8] sm:$0xff]
    %v184 = vld [vmem:[#allocation7 + $0x10] sm:$0xff]
    %v185 = vld [vmem:[#allocation7 + $0x18] sm:$0xff]
    %v186 = vld [vmem:[#allocation7 + $0x20] sm:$0xff]
    %v187 = vld [vmem:[#allocation7 + $0x28] sm:$0xff]
    %v188 = vld [vmem:[#allocation7 + $0x30] sm:$0xff]
    %v189 = vld [vmem:[#allocation7 + $0x38] sm:$0xff]
    %v190 = vld [vmem:[#allocation7 + $0x40] sm:$0xff]
    %v191 = vld [vmem:[#allocation7 + $0x48] sm:$0xff]
    %v192 = vld [vmem:[#allocation7 + $0x50] sm:$0xff]
    %v193 = vld [vmem:[#allocation7 + $0x58] sm:$0xff]
    %v194 = vld [vmem:[#allocation7 + $0x60] sm:$0xff]
    %v195 = vld [vmem:[#allocation7 + $0x68] sm:$0xff]
    %v196 = vld [vmem:[#allocation7 + $0x70] sm:$0xff]
    %v197 = vld [vmem:[#allocation7 + $0x78] sm:$0xff]
    %v198 = vld [vmem:[%s4] sm:$0x1]
    %v200 = vlaneseq
    %v201 = vshrl.u32 %v200, 7
    %v202 = vsub.s32 0, %v201
    %v203 = vrot.slane %v198, %v202
    %205 = vmatprep.subr.mxu0 0.0
    %206 = vmatpush1.msra.mxu0 %v182
    %207 = vmatprep.subr.mxu0 0.0
    %208 = vmatpush1.msra.mxu0 %v183
    %209 = vmatprep.subr.mxu0 0.0
    %210 = vmatpush1.msra.mxu0 %v184
    %211 = vmatprep.subr.mxu0 0.0
    %212 = vmatpush1.msra.mxu0 %v185
    %213 = vmatprep.subr.mxu0 0.0
    %214 = vmatpush1.msra.mxu0 %v186
    %215 = vmatprep.subr.mxu0 0.0
    %216 = vmatpush1.msra.mxu0 %v187
    %217 = vmatprep.subr.mxu0 0.0
    %218 = vmatpush1.msra.mxu0 %v188
    %219 = vmatprep.subr.mxu0 0.0
    %220 = vmatpush1.msra.mxu0 %v189
    %221 = vmatprep.subr.mxu0 0.0
    %222 = vmatpush1.msra.mxu0 %v190
    %223 = vmatprep.subr.mxu0 0.0
    %224 = vmatpush1.msra.mxu0 %v191
    %225 = vmatprep.subr.mxu0 0.0
    %226 = vmatpush1.msra.mxu0 %v192
    %227 = vmatprep.subr.mxu0 0.0
    %228 = vmatpush1.msra.mxu0 %v193
    %229 = vmatprep.subr.mxu0 0.0
    %230 = vmatpush1.msra.mxu0 %v194
    %231 = vmatprep.subr.mxu0 0.0
    %232 = vmatpush1.msra.mxu0 %v195
    %233 = vmatprep.subr.mxu0 0.0
    %234 = vmatpush1.msra.mxu0 %v196
    %235 = vmatprep.subr.mxu0 0.0
    %236 = vmatpush1.msra.mxu0 %v197
    %237 = vmatprep.subr.mxu0 0.0
    %238 = vmatpush1.msra.mxu0 0.0
    %239 = vmatprep.subr.mxu0 0.0
    %240 = vmatpush1.msra.mxu0 0.0
    %241 = vmatprep.subr.mxu0 0.0
    %242 = vmatpush1.msra.mxu0 0.0
    %243 = vmatprep.subr.mxu0 0.0
    %244 = vmatpush1.msra.mxu0 0.0
    %245 = vmatprep.subr.mxu0 0.0
    %246 = vmatpush1.msra.mxu0 0.0
    %247 = vmatprep.subr.mxu0 0.0
    %248 = vmatpush1.msra.mxu0 0.0
    %249 = vmatprep.subr.mxu0 0.0
    %250 = vmatpush1.msra.mxu0 0.0
    %251 = vmatprep.subr.mxu0 0.0
    %252 = vmatpush1.msra.mxu0 0.0
    %253 = vmatprep.subr.mxu0 0.0
    %254 = vmatpush1.msra.mxu0 0.0
    %255 = vmatprep.subr.mxu0 0.0
    %256 = vmatpush1.msra.mxu0 0.0
    %257 = vmatprep.subr.mxu0 0.0
    %258 = vmatpush1.msra.mxu0 0.0
    %259 = vmatprep.subr.mxu0 0.0
    %260 = vmatpush1.msra.mxu0 0.0
    %261 = vmatprep.subr.mxu0 0.0
    %262 = vmatpush1.msra.mxu0 0.0
    %263 = vmatprep.subr.mxu0 0.0
    %264 = vmatpush1.msra.mxu0 0.0
    %265 = vmatprep.subr.mxu0 0.0
    %266 = vmatpush1.msra.mxu0 0.0
    %267 = vmatprep.subr.mxu0 0.0
    %268 = vmatpush1.msra.mxu0 0.0
    %269 = vmatprep.mubr.f32.mxu0 0.0
    %270 = vmatmul.mubr.f32.gmra.mrb[0].mxu0 %v180
    %v271 = vpop.f32.mrb[0].mxu0
    %v272 = vadd.f32 %v203, %v271
    %v273 = vpop.f32.mrb[0].mxu0
    %274 = vmatprep.mubr.f32.mxu0 0.0
    %275 = vmatmul.mubr.f32.gmra.mrb[0].mxu0 %v181
    %v276 = vpop.f32.mrb[0].mxu0
    %v277 = vadd.f32 %v203, %v276
    %v278 = vpop.f32.mrb[0].mxu0
    %279 = vdwg.mxu0
    %v280 = vmax.f32 %v272, 0.0
    %v281 = vmax.f32 %v277, 0.0
    %282 = vst [vmem:[#allocation8] sm:$0xff] %v280
    %283 = vst [vmem:[#allocation8 + $0x8] sm:$0xff] %v281
    // Predicated region
    $region34: #{_mlp_forward.1} parent=1 // pred_check
      _
    $region35: #{_mlp_forward.1} parent=1 // pred_check_branch
      %285 = sbr.rel (0) target = $region37
    $region36: #{_mlp_forward.1} parent=1 // pred_region
      %s287 = ssub.s32 256, 256
      %288 = vsyncadd [#allocation4], %s287
      %s289 = sshll.u32 [#allocation8], 4
      %s290 = int_to_ptr.vmem [resolvable:$true] %s289
      %295 = dma.vmem_to_hbm [thread:$0]  %s290, 256, %s5, [#allocation4], 128, 128, 8
    $region37: #{_mlp_forward.1} parent=1 // pred_fallthru
      _
    // Predicated region
    $region38: #{_mlp_forward.1} parent=1 // pred_check
      _
    $region39: #{_mlp_forward.1} parent=1 // pred_check_branch
      %297 = sbr.rel (0) target = $region41
    $region40: #{_mlp_forward.1} parent=1 // pred_region
      %298 = dma.done [#allocation4], 256
    $region41: #{_mlp_forward.1} parent=1 // pred_fallthru
      _
    %299 = vsyncpa [#allocation3], 1
    %300 = vsyncpa [#allocation6], 1
    %301 = vsyncpa [#allocation4], 1

</llo_original>
